<compile_context>
chip_gen: v7x
topology: tpu7x:2x2x1
jax: 0.10.0
libtpu: 0.0.40
codegen_flags: <defaults>
</compile_context>

<pallas_src>
import jax
import jax.numpy as jnp
from jax.experimental import pallas as pl
from jax.experimental.pallas import tpu as pltpu


def _round_up(x, m):
    return (x + m - 1) // m * m


def linear_attention_kernel(feat_ref, asp_ref, mask_ref,
                            wt_ref, b_ref, wf_ref, wq_ref, bfc_ref,
                            out_ref):
    # feat_ref : (B, L, D_in)   block of batch elements
    # asp_ref  : (B, D_in)
    # mask_ref : (B, L)         binary mask, L on the lane axis
    # wt_ref   : (D_in, D_mem)  shared linear weight, PRE-TRANSPOSED
    # b_ref    : (1, D_mem)
    # wf_ref   : (1, D_mem)     fc weight half acting on the projected feature
    # wq_ref   : (1, D_mem)     fc weight half acting on Q
    # bfc_ref  : (1, 1)
    # out_ref  : (B, D_mem)
    B, L, D_in = feat_ref.shape
    D_mem = wt_ref.shape[1]

    Wt = wt_ref[...]                       # (D_in, D_mem)
    bias = b_ref[...]                      # (1, D_mem)

    # feature = linear(feature): one batched MXU call over B*L rows.
    feat2 = feat_ref[...].reshape(B * L, D_in)
    f = jnp.dot(feat2, Wt, preferred_element_type=jnp.float32) + bias   # (B*L, D_mem)

    # Q = linear(linear(aspect)); the expand over L is a broadcast, so the second
    # linear is computed once per batch row (identical for every position).
    q1 = jnp.dot(asp_ref[...], Wt, preferred_element_type=jnp.float32) + bias   # (B, D_mem)
    q2 = jnp.dot(q1, Wt, preferred_element_type=jnp.float32) + bias             # (B, D_mem)

    # att_weight = fc(cat([feature, Q], dim=2))
    #            = f . w_f + Q . w_q + bfc
    # 1-wide projection kept on the VPU (multiply + lane reduce), not the MXU.
    f3 = f.reshape(B, L, D_mem)                                         # (B, L, D_mem)
    w_f = wf_ref[...]                                                   # (1, D_mem)
    w_q = wq_ref[...]                                                   # (1, D_mem)
    score_f = jnp.sum(f3 * w_f, axis=-1)                                # (B, L)
    score_q = jnp.sum(q2 * w_q, axis=-1, keepdims=True) + bfc_ref[...]  # (B, 1)
    score = score_f + score_q                                           # (B, L)

    # mask_logits + softmax along L (lane axis, lane-dense).
    mask = mask_ref[...]                                                # (B, L)
    masked = jnp.where(mask > 0.0, score, jnp.float32(-1e30))
    m = jnp.max(masked, axis=-1, keepdims=True)                         # (B, 1)
    e = jnp.exp(masked - m)                                             # (B, L)
    s = jnp.sum(e, axis=-1, keepdims=True)                              # (B, 1)
    # Exact reciprocal keeps the 1e-5 reference tolerance; approx=True would
    # move it to the (idle) EUP slot if a looser tolerance is acceptable.
    attn = e * pl.reciprocal(s, approx=False)                           # (B, L)

    # out[b, m] = sum_l attn[b, l] * f[b, l, m]   (VPU broadcast + sublane reduce)
    out_ref[...] = jnp.sum(f3 * attn[:, :, None], axis=1)               # (B, D_mem)


def linear_attention(feature, aspect_v, dmask, W, b, Wfc, bfc, *, block_b=None):
    """feature [N, L, D_in], aspect_v [N, D_in], dmask [N, L] -> [N, D_mem]."""
    N, L, D_in = feature.shape
    D_mem = W.shape[0]
    f32 = jnp.float32

    # Batch elements per grid step: multiple of 8 (sublane-dense stores), capped.
    if block_b is None:
        block_b = min(128, _round_up(N, 8))
    block_b = max(8, _round_up(block_b, 8))
    n_pad = _round_up(N, block_b)

    feature = feature.astype(f32)
    aspect_v = aspect_v.astype(f32)
    dmask = dmask.astype(f32)
    if n_pad != N:
        pad = n_pad - N
        # Padded rows have an all-zero mask -> uniform softmax, finite, sliced off.
        feature = jnp.pad(feature, ((0, pad), (0, 0), (0, 0)))
        aspect_v = jnp.pad(aspect_v, ((0, pad), (0, 0)))
        dmask = jnp.pad(dmask, ((0, pad), (0, 0)))

    Wt = W.T.astype(f32)                             # (D_in, D_mem) pre-transposed
    b2 = b.reshape(1, D_mem).astype(f32)
    w_f = Wfc[:, :D_mem].reshape(1, D_mem).astype(f32)
    w_q = Wfc[:, D_mem:].reshape(1, D_mem).astype(f32)
    bfc2 = bfc.reshape(1, 1).astype(f32)

    out = pl.pallas_call(
        linear_attention_kernel,
        out_shape=jax.ShapeDtypeStruct((n_pad, D_mem), f32),
        grid_spec=pltpu.PrefetchScalarGridSpec(
            num_scalar_prefetch=0,
            grid=(n_pad // block_b,),
            in_specs=[
                pl.BlockSpec((block_b, L, D_in), lambda n: (n, 0, 0)),   # feature
                pl.BlockSpec((block_b, D_in), lambda n: (n, 0)),         # aspect_v
                pl.BlockSpec((block_b, L), lambda n: (n, 0)),            # dmask
                pl.BlockSpec((D_in, D_mem), lambda n: (0, 0)),           # W^T (shared)
                pl.BlockSpec((1, D_mem), lambda n: (0, 0)),              # b
                pl.BlockSpec((1, D_mem), lambda n: (0, 0)),              # fc weight (feature half)
                pl.BlockSpec((1, D_mem), lambda n: (0, 0)),              # fc weight (Q half)
                pl.BlockSpec((1, 1), lambda n: (0, 0)),                  # fc bias
            ],
            out_specs=pl.BlockSpec((block_b, D_mem), lambda n: (n, 0)),
        ),
        compiler_params=pltpu.CompilerParams(
            dimension_semantics=("parallel",)),   # batch axis shardable (v7x 2 TCs)
    )(feature, aspect_v, dmask, Wt, b2, w_f, w_q, bfc2)
    return out[:N]


def reference_forward(feature, aspect_v, dmask, W, b, Wfc, bfc):
    # Pure-JAX mirror of the PyTorch forward (for verification).
    Q = aspect_v @ W.T + b                               # [N, M]
    Q = jnp.broadcast_to(Q[:, None, :], feature.shape)   # [N, L, M] (in == mem)
    Q = Q @ W.T + b
    f = feature @ W.T + b
    att = jnp.concatenate([f, Q], axis=2)                # [N, L, 2M]
    w = att @ Wfc.T + bfc                                # [N, L, 1]
    dm = dmask[:, :, None]
    w = w * dm + (1.0 - dm) * (-1e30)
    attn = jax.nn.softmax(w, axis=1)
    out = jnp.einsum('nlm,nlk->nmk', f, attn)[..., 0]    # [N, M]
    return out


if __name__ == "__main__":
    # NOTE: self.leakyrelu is defined in the module but never used in forward().
    N, L = 20, 8
    in_dim = mem_dim = 32   # module requires in_dim == mem_dim (expand_as)

    key = jax.random.PRNGKey(0)
    k1, k2, k3, k4, k5, k6, k7 = jax.random.split(key, 7)

    feature = jax.random.normal(k1, (N, L, in_dim), dtype=jnp.float32)
    aspect_v = jax.random.normal(k2, (N, in_dim), dtype=jnp.float32)
    dmask = (jax.random.uniform(k3, (N, L)) > 0.3).astype(jnp.float32)
    dmask = dmask.at[:, 0].set(1.0)  # at least one valid position per row

    # Deterministic synthetic parameters (nn.Linear shapes).
    lim = 1.0 / jnp.sqrt(in_dim)
    W = jax.random.uniform(k4, (mem_dim, in_dim), minval=-lim, maxval=lim,
                           dtype=jnp.float32)
    b = jax.random.uniform(k5, (mem_dim,), minval=-lim, maxval=lim,
                           dtype=jnp.float32)
    lim2 = 1.0 / jnp.sqrt(2 * mem_dim)
    Wfc = jax.random.uniform(k6, (1, 2 * mem_dim), minval=-lim2, maxval=lim2,
                             dtype=jnp.float32)
    bfc = jax.random.uniform(k7, (1,), minval=-lim2, maxval=lim2,
                             dtype=jnp.float32)

    ref = reference_forward(feature, aspect_v, dmask, W, b, Wfc, bfc)

    # Multi-step grid with batch padding (N=20 -> N_pad=24, grid=(3,)).
    out_a = jax.block_until_ready(
        linear_attention(feature, aspect_v, dmask, W, b, Wfc, bfc, block_b=8))
    # Default blocking: whole (padded) batch in one grid step.
    out_b = jax.block_until_ready(
        linear_attention(feature, aspect_v, dmask, W, b, Wfc, bfc))

    assert out_a.shape == (N, mem_dim) and out_b.shape == (N, mem_dim)
    assert jnp.allclose(out_a, ref, rtol=1e-5, atol=1e-5), (
        f"mismatch (block_b=8): max abs diff {jnp.max(jnp.abs(out_a - ref))}")
    assert jnp.allclose(out_b, ref, rtol=1e-5, atol=1e-5), (
        f"mismatch (default block): max abs diff {jnp.max(jnp.abs(out_b - ref))}")

    print("KERNEL_OK")
</pallas_src>

<mosaic_0001>
module attributes {stable_mosaic.version = 11 : i64} {
  func.func @linear_attention_kernel(%arg0: i32, %arg1: memref<8x8x32xf32, #tpu.memory_space<vmem>>, %arg2: memref<8x32xf32, #tpu.memory_space<vmem>>, %arg3: memref<8x8xf32, #tpu.memory_space<vmem>>, %arg4: memref<32x32xf32, #tpu.memory_space<vmem>>, %arg5: memref<1x32xf32, #tpu.memory_space<vmem>>, %arg6: memref<1x32xf32, #tpu.memory_space<vmem>>, %arg7: memref<1x32xf32, #tpu.memory_space<vmem>>, %arg8: memref<1x1xf32, #tpu.memory_space<vmem>>, %arg9: memref<8x32xf32, #tpu.memory_space<vmem>>) attributes {dimension_semantics = [#tpu.dimension_semantics<parallel>], iteration_bounds = array<i64: 3>, scalar_prefetch = 0 : i64, scratch_operands = 0 : i64, tpu.core_type = #tpu.core_type<tc>, window_params = [{transform_indices = @transform_0, window_bounds = array<i64: 8, 8, 32>}, {transform_indices = @transform_1, window_bounds = array<i64: 8, 32>}, {transform_indices = @transform_2, window_bounds = array<i64: 8, 8>}, {pipeline_mode = #tpu.pipeline_mode<synchronous>, transform_indices = @transform_3, window_bounds = array<i64: 32, 32>}, {pipeline_mode = #tpu.pipeline_mode<synchronous>, transform_indices = @transform_4, window_bounds = array<i64: 1, 32>}, {pipeline_mode = #tpu.pipeline_mode<synchronous>, transform_indices = @transform_5, window_bounds = array<i64: 1, 32>}, {pipeline_mode = #tpu.pipeline_mode<synchronous>, transform_indices = @transform_6, window_bounds = array<i64: 1, 32>}, {pipeline_mode = #tpu.pipeline_mode<synchronous>, transform_indices = @transform_7, window_bounds = array<i64: 1, 1>}, {transform_indices = @transform_8, window_bounds = array<i64: 8, 32>}]} {
    %c0 = arith.constant 0 : index
    %c0_0 = arith.constant 0 : index
    %0 = vector.load %arg4[%c0, %c0_0] : memref<32x32xf32, #tpu.memory_space<vmem>>, vector<32x32xf32>
    %c0_1 = arith.constant 0 : index
    %c0_2 = arith.constant 0 : index
    %1 = vector.load %arg5[%c0_1, %c0_2] : memref<1x32xf32, #tpu.memory_space<vmem>>, vector<1x32xf32>
    %c0_3 = arith.constant 0 : index
    %c0_4 = arith.constant 0 : index
    %c0_5 = arith.constant 0 : index
    %2 = vector.load %arg1[%c0_3, %c0_4, %c0_5] : memref<8x8x32xf32, #tpu.memory_space<vmem>>, vector<8x8x32xf32>
    %3 = vector.shape_cast %2 : vector<8x8x32xf32> to vector<64x32xf32>
    %cst = arith.constant dense<0.000000e+00> : vector<64x32xf32>
    %4 = tpu.matmul %3, %0, %cst {dimension_numbers = #tpu.dot_dimension_numbers<[1], [0], [0], [1], [0, 0, 1, 1], [], []>} : vector<64x32xf32>, vector<32x32xf32>, vector<64x32xf32> -> vector<64x32xf32>
    %5 = vector.broadcast %1 : vector<1x32xf32> to vector<64x32xf32>
    %6 = arith.addf %4, %5 : vector<64x32xf32>
    %c0_6 = arith.constant 0 : index
    %c0_7 = arith.constant 0 : index
    %7 = vector.load %arg2[%c0_6, %c0_7] : memref<8x32xf32, #tpu.memory_space<vmem>>, vector<8x32xf32>
    %cst_8 = arith.constant dense<0.000000e+00> : vector<8x32xf32>
    %8 = tpu.matmul %7, %0, %cst_8 {dimension_numbers = #tpu.dot_dimension_numbers<[1], [0], [0], [1], [0, 0, 1, 1], [], []>} : vector<8x32xf32>, vector<32x32xf32>, vector<8x32xf32> -> vector<8x32xf32>
    %9 = vector.broadcast %1 : vector<1x32xf32> to vector<8x32xf32>
    %10 = arith.addf %8, %9 : vector<8x32xf32>
    %cst_9 = arith.constant dense<0.000000e+00> : vector<8x32xf32>
    %11 = tpu.matmul %10, %0, %cst_9 {dimension_numbers = #tpu.dot_dimension_numbers<[1], [0], [0], [1], [0, 0, 1, 1], [], []>} : vector<8x32xf32>, vector<32x32xf32>, vector<8x32xf32> -> vector<8x32xf32>
    %12 = vector.broadcast %1 : vector<1x32xf32> to vector<8x32xf32>
    %13 = arith.addf %11, %12 : vector<8x32xf32>
    %14 = vector.shape_cast %6 : vector<64x32xf32> to vector<8x8x32xf32>
    %c0_10 = arith.constant 0 : index
    %c0_11 = arith.constant 0 : index
    %15 = vector.load %arg6[%c0_10, %c0_11] : memref<1x32xf32, #tpu.memory_space<vmem>>, vector<1x32xf32>
    %c0_12 = arith.constant 0 : index
    %c0_13 = arith.constant 0 : index
    %16 = vector.load %arg7[%c0_12, %c0_13] : memref<1x32xf32, #tpu.memory_space<vmem>>, vector<1x32xf32>
    %17 = vector.shape_cast %15 : vector<1x32xf32> to vector<1x1x32xf32>
    %18 = vector.broadcast %17 : vector<1x1x32xf32> to vector<8x8x32xf32>
    %19 = arith.mulf %14, %18 : vector<8x8x32xf32>
    %cst_14 = arith.constant dense<0.000000e+00> : vector<8x8xf32>
    %20 = vector.multi_reduction <add>, %19, %cst_14 [2] : vector<8x8x32xf32> to vector<8x8xf32>
    %21 = vector.broadcast %16 : vector<1x32xf32> to vector<8x32xf32>
    %22 = arith.mulf %13, %21 : vector<8x32xf32>
    %cst_15 = arith.constant dense<0.000000e+00> : vector<8xf32>
    %23 = vector.multi_reduction <add>, %22, %cst_15 [1] : vector<8x32xf32> to vector<8xf32>
    %24 = vector.shape_cast %23 : vector<8xf32> to vector<8x1xf32>
    %c0_16 = arith.constant 0 : index
    %c0_17 = arith.constant 0 : index
    %25 = vector.load %arg8[%c0_16, %c0_17] : memref<1x1xf32, #tpu.memory_space<vmem>>, vector<1x1xf32>
    %26 = vector.broadcast %25 : vector<1x1xf32> to vector<8x1xf32>
    %27 = arith.addf %24, %26 : vector<8x1xf32>
    %28 = vector.broadcast %27 : vector<8x1xf32> to vector<8x8xf32>
    %29 = arith.addf %20, %28 : vector<8x8xf32>
    %c0_18 = arith.constant 0 : index
    %c0_19 = arith.constant 0 : index
    %30 = vector.load %arg3[%c0_18, %c0_19] : memref<8x8xf32, #tpu.memory_space<vmem>>, vector<8x8xf32>
    %cst_20 = arith.constant 0.000000e+00 : f32
    %31 = vector.broadcast %cst_20 : f32 to vector<8x8xf32>
    %32 = arith.cmpf ogt, %30, %31 : vector<8x8xf32>
    %cst_21 = arith.constant -1.000000e+30 : f32
    %33 = vector.broadcast %cst_21 : f32 to vector<8x8xf32>
    %34 = arith.select %32, %29, %33 : vector<8x8xi1>, vector<8x8xf32>
    %cst_22 = arith.constant dense<0xFF800000> : vector<8xf32>
    %35 = vector.multi_reduction <maximumf>, %34, %cst_22 [1] : vector<8x8xf32> to vector<8xf32>
    %36 = vector.shape_cast %35 : vector<8xf32> to vector<8x1xf32>
    %37 = vector.broadcast %36 : vector<8x1xf32> to vector<8x8xf32>
    %38 = arith.subf %34, %37 : vector<8x8xf32>
    %39 = math.exp %38 : vector<8x8xf32>
    %cst_23 = arith.constant dense<0.000000e+00> : vector<8xf32>
    %40 = vector.multi_reduction <add>, %39, %cst_23 [1] : vector<8x8xf32> to vector<8xf32>
    %41 = vector.shape_cast %40 : vector<8xf32> to vector<8x1xf32>
    %42 = tpu.reciprocal %41 : vector<8x1xf32> -> vector<8x1xf32>
    %43 = vector.broadcast %42 : vector<8x1xf32> to vector<8x8xf32>
    %44 = arith.mulf %39, %43 : vector<8x8xf32>
    %45 = vector.shape_cast %44 : vector<8x8xf32> to vector<8x8x1xf32>
    %46 = vector.broadcast %45 : vector<8x8x1xf32> to vector<8x8x32xf32>
    %47 = arith.mulf %14, %46 : vector<8x8x32xf32>
    %cst_24 = arith.constant dense<0.000000e+00> : vector<8x32xf32>
    %48 = vector.multi_reduction <add>, %47, %cst_24 [1] : vector<8x8x32xf32> to vector<8x32xf32>
    %c0_25 = arith.constant 0 : index
    %c0_26 = arith.constant 0 : index
    %49 = vector.load %arg9[%c0_25, %c0_26] : memref<8x32xf32, #tpu.memory_space<vmem>>, vector<8x32xf32>
    tpu.vector_store %arg9[%c0_25, %c0_26], %48 {strides = array<i32>} : memref<8x32xf32, #tpu.memory_space<vmem>>, vector<8x32xf32>,
    return
  }
  func.func @transform_0(%arg0: i32) -> (i32, i32, i32) {
    %c0_i32 = arith.constant 0 : i32
    %c0_i32_0 = arith.constant 0 : i32
    %c0_i32_1 = arith.constant 0 : i32
    return %arg0, %c0_i32, %c0_i32_0 : i32, i32, i32
  }
  func.func @transform_1(%arg0: i32) -> (i32, i32) {
    %c0_i32 = arith.constant 0 : i32
    %c0_i32_0 = arith.constant 0 : i32
    return %arg0, %c0_i32 : i32, i32
  }
  func.func @transform_2(%arg0: i32) -> (i32, i32) {
    %c0_i32 = arith.constant 0 : i32
    %c0_i32_0 = arith.constant 0 : i32
    return %arg0, %c0_i32 : i32, i32
  }
  func.func @transform_3(%arg0: i32) -> (i32, i32) {
    %c0_i32 = arith.constant 0 : i32
    %c0_i32_0 = arith.constant 0 : i32
    %c0_i32_1 = arith.constant 0 : i32
    return %c0_i32, %c0_i32_0 : i32, i32
  }
  func.func @transform_4(%arg0: i32) -> (i32, i32) {
    %c0_i32 = arith.constant 0 : i32
    %c0_i32_0 = arith.constant 0 : i32
    %c0_i32_1 = arith.constant 0 : i32
    return %c0_i32, %c0_i32_0 : i32, i32
  }
  func.func @transform_5(%arg0: i32) -> (i32, i32) {
    %c0_i32 = arith.constant 0 : i32
    %c0_i32_0 = arith.constant 0 : i32
    %c0_i32_1 = arith.constant 0 : i32
    return %c0_i32, %c0_i32_0 : i32, i32
  }
  func.func @transform_6(%arg0: i32) -> (i32, i32) {
    %c0_i32 = arith.constant 0 : i32
    %c0_i32_0 = arith.constant 0 : i32
    %c0_i32_1 = arith.constant 0 : i32
    return %c0_i32, %c0_i32_0 : i32, i32
  }
  func.func @transform_7(%arg0: i32) -> (i32, i32) {
    %c0_i32 = arith.constant 0 : i32
    %c0_i32_0 = arith.constant 0 : i32
    %c0_i32_1 = arith.constant 0 : i32
    return %c0_i32, %c0_i32_0 : i32, i32
  }
  func.func @transform_8(%arg0: i32) -> (i32, i32) {
    %c0_i32 = arith.constant 0 : i32
    %c0_i32_0 = arith.constant 0 : i32
    return %arg0, %c0_i32 : i32, i32
  }
}

</mosaic_0001>

<llo_original>
// kernel: tpu_custom_call.1
$region0: #{tpu_custom_call.1}
  #allocation0 [shape = 'u32[]', space=smem, size = 0x4, offset = 0x4, fixed_abs, tag = 'smem constant byte address 0x4 - core index']
  #allocation1 [shape = 'u32[144,128]{1,0:T(1,128)}', space=vmem, size = 0x12000, scoped, tag = 'internal scratch']
  #allocation2 [shape = 'f32[1,1]{1,0:T(1,128)S(1)}', space=vmem, size = 0x200, scoped, tag = 'scoped memory for tpu_custom_call.1']
  %s0 = inlined_call_operand.hbm [shape: f32[24,8,32], index: 0, kind: input, shape index: {}]
  %s1 = inlined_call_operand.hbm [shape: f32[24,32], index: 1, kind: input, shape index: {}]
  %s2 = inlined_call_operand.vmem [shape: f32[24,8], index: 2, kind: input, shape index: {}]
  %s3 = inlined_call_operand.vmem [shape: f32[32,32], index: 3, kind: input, shape index: {}]
  %s4 = inlined_call_operand.vmem [shape: f32[1,32], index: 4, kind: input, shape index: {}]
  %s5 = inlined_call_operand.vmem [shape: f32[1,32], index: 5, kind: input, shape index: {}]
  %s6 = inlined_call_operand.vmem [shape: f32[1,32], index: 6, kind: input, shape index: {}]
  %s7 = inlined_call_operand.<no memory space> [shape: f32[1,1], index: 7, kind: input, shape index: {}]
  %s8 = inlined_call_operand.hbm [shape: f32[24,32], index: 8, kind: output, shape index: {}]
  %s9 = sld [smem:[#allocation0]]
  $region73: #{tpu_custom_call.1} parent=0
    _
  %s11 = ssub.s32 1, %s9
  %s12 = scalar_select 0, %s11, %s9
  %v13 = vstv %s7
  %14 = vst [vmem:[#allocation2] sm:$0x1] %v13
  $region1: #{tpu_custom_call.1} parent=0
    #allocation3 [shape = 'u8[65536]{0}', space=vmem, size = 0x10000, scoped, tag = 'input window, operand 0']
    #allocation4 [shape = 's32[2]{0}', space=sflag, size = 0x8, scoped, tag = 'scoped memory for tpu_custom_call.1']
    #allocation5 [shape = 's32[2]{0}', space=sflag, size = 0x8, scoped, tag = 'scoped memory for tpu_custom_call.1']
    #allocation6 [shape = 'u8[8192]{0}', space=vmem, size = 0x2000, scoped, tag = 'input window, operand 1']
    #allocation7 [shape = 's32[2]{0}', space=sflag, size = 0x8, scoped, tag = 'scoped memory for tpu_custom_call.1']
    #allocation8 [shape = 'u8[8192]{0}', space=vmem, size = 0x2000, scoped, tag = 'output window, operand 0']
    %15 = vsyncpa [#allocation4], 0
    %s16 = scalar_lea.sflag [#allocation4], 1
    %17 = vsyncpa %s16, 0
    %18 = vsyncpa [#allocation7], 0
    %s19 = scalar_lea.sflag [#allocation7], 1
    %20 = vsyncpa %s19, 0
    %21 = vsyncpa [#allocation5], 0
    %s22 = scalar_lea.sflag [#allocation5], 1
    %23 = vsyncpa %s22, 0
    loop: start=0, step=1, limit=5
    $region2: #{tpu_custom_call.1} parent=1 // loop_pre_header
      _
    $region3: #{tpu_custom_call.1} parent=1 // loop_header
      %s25 = sphi 0, %s29
      %p26 = scmp.ge.s32.totalorder %s25, 5
      %s35 = sphi 0, %s37
      %s38 = sphi 0, %s35
      %s39 = sphi 0, %s38
      %s55 = sphi 0, %s39
      %s61 = sphi 0, %s63
      %s64 = sphi 0, %s61
      %s65 = sphi 0, %s64
      %s81 = sphi 0, %s65
      %s87 = sphi 0, %s89
      %s90 = sphi 0, %s87
      %s91 = sphi 0, %s90
      %s107 = sphi 0, %s91
      %s111 = sphi 0, %s111
      %s113 = sphi 0, %s111
      %s114 = sphi 0, %s113
      %s128 = sphi 0, %s114
      %s132 = sphi 0, %s132
      %s134 = sphi 0, %s132
      %s135 = sphi 0, %s134
      %s149 = sphi 0, %s135
      %s153 = sphi 0, %s153
      %s155 = sphi 0, %s153
      %s156 = sphi 0, %s155
      %s170 = sphi 0, %s156
      %s174 = sphi 0, %s174
      %s176 = sphi 0, %s174
      %s177 = sphi 0, %s176
      %s191 = sphi 0, %s177
      %s195 = sphi 0, %s195
      %s197 = sphi 0, %s195
      %s198 = sphi 0, %s197
      %s212 = sphi 0, %s198
      %s218 = sphi 0, %s220
      %s221 = sphi 0, %s218
      %s222 = sphi 0, %s221
      %s238 = sphi 0, %s222
    $region4: #{tpu_custom_call.1} parent=1 // loop_header_branch
      %28 = sbr.rel (%p26) target = $region8
    $region5: #{tpu_custom_call.1} parent=1 // loop_body
      %s30 = ssub.s32 %s25, 1
      %s31 = ssub.s32 %s25, 2
      %s32 = sadd.s32 %s25, 1
      %s33 = ssub.s32 %s25, %s32
      %p34 = scmp.eq.s32.totalorder %s33, 0
      %s36 = sadd.s32 %s35, 1
      %s37 = scalar_select %p34, %s35, %s36
      %p40 = pneg %p34
      %p41 = scmp.eq.s32.totalorder %s25, 2
      %p42 = por %p40, %p41
      %p43 = scmp.ne.s32.totalorder %s35, %s38
      %p44 = scmp.eq.s32.totalorder %s25, 0
      %p45 = por %p43, %p44
      %p46 = scmp.ne.s32.totalorder %s35, %s38
      %p47 = scmp.eq.s32.totalorder %s30, 2
      %p48 = por %p46, %p47
      %p49 = scmp.ne.s32.totalorder %s38, %s39
      %p50 = scmp.eq.s32.totalorder %s30, 0
      %p51 = por %p49, %p50
      %p52 = scmp.ne.s32.totalorder %s38, %s39
      %p53 = scmp.eq.s32.totalorder %s31, 2
      %p54 = por %p52, %p53
      %p56 = scmp.ne.s32.totalorder %s39, %s55
      %p57 = scmp.eq.s32.totalorder %s31, 0
      %p58 = por %p56, %p57
      %s59 = ssub.s32 %s25, %s32
      %p60 = scmp.eq.s32.totalorder %s59, 0
      %s62 = sadd.s32 %s61, 1
      %s63 = scalar_select %p60, %s61, %s62
      %p66 = pneg %p60
      %p67 = scmp.eq.s32.totalorder %s25, 2
      %p68 = por %p66, %p67
      %p69 = scmp.ne.s32.totalorder %s61, %s64
      %p70 = scmp.eq.s32.totalorder %s25, 0
      %p71 = por %p69, %p70
      %p72 = scmp.ne.s32.totalorder %s61, %s64
      %p73 = scmp.eq.s32.totalorder %s30, 2
      %p74 = por %p72, %p73
      %p75 = scmp.ne.s32.totalorder %s64, %s65
      %p76 = scmp.eq.s32.totalorder %s30, 0
      %p77 = por %p75, %p76
      %p78 = scmp.ne.s32.totalorder %s64, %s65
      %p79 = scmp.eq.s32.totalorder %s31, 2
      %p80 = por %p78, %p79
      %p82 = scmp.ne.s32.totalorder %s65, %s81
      %p83 = scmp.eq.s32.totalorder %s31, 0
      %p84 = por %p82, %p83
      %s85 = ssub.s32 %s25, %s32
      %p86 = scmp.eq.s32.totalorder %s85, 0
      %s88 = sadd.s32 %s87, 1
      %s89 = scalar_select %p86, %s87, %s88
      %p92 = pneg %p86
      %p93 = scmp.eq.s32.totalorder %s25, 2
      %p94 = por %p92, %p93
      %p95 = scmp.ne.s32.totalorder %s87, %s90
      %p96 = scmp.eq.s32.totalorder %s25, 0
      %p97 = por %p95, %p96
      %p98 = scmp.ne.s32.totalorder %s87, %s90
      %p99 = scmp.eq.s32.totalorder %s30, 2
      %p100 = por %p98, %p99
      %p101 = scmp.ne.s32.totalorder %s90, %s91
      %p102 = scmp.eq.s32.totalorder %s30, 0
      %p103 = por %p101, %p102
      %p104 = scmp.ne.s32.totalorder %s90, %s91
      %p105 = scmp.eq.s32.totalorder %s31, 2
      %p106 = por %p104, %p105
      %p108 = scmp.ne.s32.totalorder %s91, %s107
      %p109 = scmp.eq.s32.totalorder %s31, 0
      %p110 = por %p108, %p109
      %s112 = sadd.s32 %s111, 1
      %p115 = scmp.eq.s32.totalorder %s25, 2
      %p116 = scmp.ne.s32.totalorder %s111, %s113
      %p117 = scmp.eq.s32.totalorder %s25, 0
      %p118 = por %p116, %p117
      %p119 = scmp.ne.s32.totalorder %s111, %s113
      %p120 = scmp.eq.s32.totalorder %s30, 2
      %p121 = por %p119, %p120
      %p122 = scmp.ne.s32.totalorder %s113, %s114
      %p123 = scmp.eq.s32.totalorder %s30, 0
      %p124 = por %p122, %p123
      %p125 = scmp.ne.s32.totalorder %s113, %s114
      %p126 = scmp.eq.s32.totalorder %s31, 2
      %p127 = por %p125, %p126
      %p129 = scmp.ne.s32.totalorder %s114, %s128
      %p130 = scmp.eq.s32.totalorder %s31, 0
      %p131 = por %p129, %p130
      %s133 = sadd.s32 %s132, 1
      %p136 = scmp.eq.s32.totalorder %s25, 2
      %p137 = scmp.ne.s32.totalorder %s132, %s134
      %p138 = scmp.eq.s32.totalorder %s25, 0
      %p139 = por %p137, %p138
      %p140 = scmp.ne.s32.totalorder %s132, %s134
      %p141 = scmp.eq.s32.totalorder %s30, 2
      %p142 = por %p140, %p141
      %p143 = scmp.ne.s32.totalorder %s134, %s135
      %p144 = scmp.eq.s32.totalorder %s30, 0
      %p145 = por %p143, %p144
      %p146 = scmp.ne.s32.totalorder %s134, %s135
      %p147 = scmp.eq.s32.totalorder %s31, 2
      %p148 = por %p146, %p147
      %p150 = scmp.ne.s32.totalorder %s135, %s149
      %p151 = scmp.eq.s32.totalorder %s31, 0
      %p152 = por %p150, %p151
      %s154 = sadd.s32 %s153, 1
      %p157 = scmp.eq.s32.totalorder %s25, 2
      %p158 = scmp.ne.s32.totalorder %s153, %s155
      %p159 = scmp.eq.s32.totalorder %s25, 0
      %p160 = por %p158, %p159
      %p161 = scmp.ne.s32.totalorder %s153, %s155
      %p162 = scmp.eq.s32.totalorder %s30, 2
      %p163 = por %p161, %p162
      %p164 = scmp.ne.s32.totalorder %s155, %s156
      %p165 = scmp.eq.s32.totalorder %s30, 0
      %p166 = por %p164, %p165
      %p167 = scmp.ne.s32.totalorder %s155, %s156
      %p168 = scmp.eq.s32.totalorder %s31, 2
      %p169 = por %p167, %p168
      %p171 = scmp.ne.s32.totalorder %s156, %s170
      %p172 = scmp.eq.s32.totalorder %s31, 0
      %p173 = por %p171, %p172
      %s175 = sadd.s32 %s174, 1
      %p178 = scmp.eq.s32.totalorder %s25, 2
      %p179 = scmp.ne.s32.totalorder %s174, %s176
      %p180 = scmp.eq.s32.totalorder %s25, 0
      %p181 = por %p179, %p180
      %p182 = scmp.ne.s32.totalorder %s174, %s176
      %p183 = scmp.eq.s32.totalorder %s30, 2
      %p184 = por %p182, %p183
      %p185 = scmp.ne.s32.totalorder %s176, %s177
      %p186 = scmp.eq.s32.totalorder %s30, 0
      %p187 = por %p185, %p186
      %p188 = scmp.ne.s32.totalorder %s176, %s177
      %p189 = scmp.eq.s32.totalorder %s31, 2
      %p190 = por %p188, %p189
      %p192 = scmp.ne.s32.totalorder %s177, %s191
      %p193 = scmp.eq.s32.totalorder %s31, 0
      %p194 = por %p192, %p193
      %s196 = sadd.s32 %s195, 1
      %p199 = scmp.eq.s32.totalorder %s25, 2
      %p200 = scmp.ne.s32.totalorder %s195, %s197
      %p201 = scmp.eq.s32.totalorder %s25, 0
      %p202 = por %p200, %p201
      %p203 = scmp.ne.s32.totalorder %s195, %s197
      %p204 = scmp.eq.s32.totalorder %s30, 2
      %p205 = por %p203, %p204
      %p206 = scmp.ne.s32.totalorder %s197, %s198
      %p207 = scmp.eq.s32.totalorder %s30, 0
      %p208 = por %p206, %p207
      %p209 = scmp.ne.s32.totalorder %s197, %s198
      %p210 = scmp.eq.s32.totalorder %s31, 2
      %p211 = por %p209, %p210
      %p213 = scmp.ne.s32.totalorder %s198, %s212
      %p214 = scmp.eq.s32.totalorder %s31, 0
      %p215 = por %p213, %p214
      %s216 = ssub.s32 %s25, %s32
      %p217 = scmp.eq.s32.totalorder %s216, 0
      %s219 = sadd.s32 %s218, 1
      %s220 = scalar_select %p217, %s218, %s219
      %p223 = pneg %p217
      %p224 = scmp.eq.s32.totalorder %s25, 2
      %p225 = por %p223, %p224
      %p226 = scmp.ne.s32.totalorder %s218, %s221
      %p227 = scmp.eq.s32.totalorder %s25, 0
      %p228 = por %p226, %p227
      %p229 = scmp.ne.s32.totalorder %s218, %s221
      %p230 = scmp.eq.s32.totalorder %s30, 2
      %p231 = por %p229, %p230
      %p232 = scmp.ne.s32.totalorder %s221, %s222
      %p233 = scmp.eq.s32.totalorder %s30, 0
      %p234 = por %p232, %p233
      %p235 = scmp.ne.s32.totalorder %s221, %s222
      %p236 = scmp.eq.s32.totalorder %s31, 2
      %p237 = por %p235, %p236
      %p239 = scmp.ne.s32.totalorder %s222, %s238
      %p240 = scmp.eq.s32.totalorder %s31, 0
      %p241 = por %p239, %p240
      %p242 = scmp.le.s32.totalorder 1, %s25
      %p243 = scmp.lt.s32.totalorder %s25, 4
      %p244 = pnand %p242, %p243
      %p245 = pneg %p244
      // Predicated region
      $region9: #{tpu_custom_call.1} parent=5 // pred_check
        _
      $region10: #{tpu_custom_call.1} parent=5 // pred_check_branch
        %247 = sbr.rel (%p244) target = $region12
      $region11: #{tpu_custom_call.1} parent=5 // pred_region
        %s248 = ssub.s32 %s25, 1
        // Predicated region
        $region13: #{tpu_custom_call.1} parent=11 // pred_check
          %p249 = pneg %p124
        $region14: #{tpu_custom_call.1} parent=11 // pred_check_branch
          %251 = sbr.rel (%p249) target = $region16
        $region15: #{tpu_custom_call.1} parent=11 // pred_region
          _
        $region16: #{tpu_custom_call.1} parent=11 // pred_fallthru
          _
        // Predicated region
        $region17: #{tpu_custom_call.1} parent=11 // pred_check
          %p252 = pneg %p145
        $region18: #{tpu_custom_call.1} parent=11 // pred_check_branch
          %254 = sbr.rel (%p252) target = $region20
        $region19: #{tpu_custom_call.1} parent=11 // pred_region
          _
        $region20: #{tpu_custom_call.1} parent=11 // pred_fallthru
          _
        // Predicated region
        $region21: #{tpu_custom_call.1} parent=11 // pred_check
          %p255 = pneg %p166
        $region22: #{tpu_custom_call.1} parent=11 // pred_check_branch
          %257 = sbr.rel (%p255) target = $region24
        $region23: #{tpu_custom_call.1} parent=11 // pred_region
          _
        $region24: #{tpu_custom_call.1} parent=11 // pred_fallthru
          _
        // Predicated region
        $region25: #{tpu_custom_call.1} parent=11 // pred_check
          %p258 = pneg %p187
        $region26: #{tpu_custom_call.1} parent=11 // pred_check_branch
          %260 = sbr.rel (%p258) target = $region28
        $region27: #{tpu_custom_call.1} parent=11 // pred_region
          _
        $region28: #{tpu_custom_call.1} parent=11 // pred_fallthru
          _
        // Predicated region
        $region29: #{tpu_custom_call.1} parent=11 // pred_check
          %p261 = pneg %p208
        $region30: #{tpu_custom_call.1} parent=11 // pred_check_branch
          %263 = sbr.rel (%p261) target = $region32
        $region31: #{tpu_custom_call.1} parent=11 // pred_region
          _
        $region32: #{tpu_custom_call.1} parent=11 // pred_fallthru
          _
      $region12: #{tpu_custom_call.1} parent=5 // pred_fallthru
        _
      %p264 = scmp.lt.s32.totalorder %s25, 3
      // Predicated region
      $region33: #{tpu_custom_call.1} parent=5 // pred_check
        %p265 = pneg %p264
      $region34: #{tpu_custom_call.1} parent=5 // pred_check_branch
        %267 = sbr.rel (%p265) target = $region36
      $region35: #{tpu_custom_call.1} parent=5 // pred_region
        // Predicated region
        $region37: #{tpu_custom_call.1} parent=35 // pred_check
          %p268 = pneg %p45
        $region38: #{tpu_custom_call.1} parent=35 // pred_check_branch
          %270 = sbr.rel (%p268) target = $region40
        $region39: #{tpu_custom_call.1} parent=35 // pred_region
          %s271 = sand.u32 %s35, 1
          %s272 = scalar_lea.sflag [#allocation4], %s271
          %s273 = sand.u32 %s35, 1
          %s274 = smul.addr %s273, 64
          %s275 = scalar_lea.vmem [#allocation3], %s274
          %s276 = smul.u32 8, %s25
          %s278 = ssub.s32 1024, 1024
          %279 = vsyncadd %s272, %s278
          %s280 = smul.addr %s276, 128
          %s281 = scalar_lea.hbm %s0, %s280
          %s282 = sshll.u32 %s275, 4
          %s283 = int_to_ptr.vmem [resolvable:$true] %s282
          %288 = dma.hbm_to_vmem [thread:$0]  %s281, 1024, %s283, %s272, 128, 128, 8
        $region40: #{tpu_custom_call.1} parent=35 // pred_fallthru
          _
        // Predicated region
        $region41: #{tpu_custom_call.1} parent=35 // pred_check
          %p289 = pneg %p71
        $region42: #{tpu_custom_call.1} parent=35 // pred_check_branch
          %291 = sbr.rel (%p289) target = $region44
        $region43: #{tpu_custom_call.1} parent=35 // pred_region
          %s292 = sand.u32 %s61, 1
          %s293 = scalar_lea.sflag [#allocation7], %s292
          %s294 = sand.u32 %s61, 1
          %s295 = smul.addr %s294, 8
          %s296 = scalar_lea.vmem [#allocation6], %s295
          %s298 = ssub.s32 128, 128
          %299 = vsyncadd %s293, %s298
          %s300 = smul.addr %s25, 128
          %s301 = scalar_lea.hbm %s1, %s300
          %s303 = sshll.u32 %s296, 4
          %s304 = int_to_ptr.vmem [resolvable:$true] %s303
          %306 = dma.hbm_to_vmem [thread:$0]  %s301, 128, %s304, %s293
        $region44: #{tpu_custom_call.1} parent=35 // pred_fallthru
          _
        // Predicated region
        $region45: #{tpu_custom_call.1} parent=35 // pred_check
          %p307 = pneg %p97
        $region46: #{tpu_custom_call.1} parent=35 // pred_check_branch
          %309 = sbr.rel (%p307) target = $region48
        $region47: #{tpu_custom_call.1} parent=35 // pred_region
          %p310 = scmp.lt.s32.totalorder %s25, 2
          %s311 = scalar_select %p310, %s25, 2
          %s312 = smul.addr %s311, 8
          %s313 = scalar_lea.vmem %s2, %s312
        $region48: #{tpu_custom_call.1} parent=35 // pred_fallthru
          _
      $region36: #{tpu_custom_call.1} parent=5 // pred_fallthru
        _
      %p314 = scmp.le.s32.totalorder 1, %s25
      %p315 = scmp.lt.s32.totalorder %s25, 4
      %p316 = pnand %p314, %p315
      %p317 = pneg %p316
      // Predicated region
      $region49: #{tpu_custom_call.1} parent=5 // pred_check
        _
      $region50: #{tpu_custom_call.1} parent=5 // pred_check_branch
        %319 = sbr.rel (%p316) target = $region52
      $region51: #{tpu_custom_call.1} parent=5 // pred_region
        %s320 = ssub.s32 %s25, 1
        %s321 = sand.u32 %s38, 1
        %s322 = scalar_lea.sflag [#allocation4], %s321
        %s323 = sand.u32 %s38, 1
        %s324 = smul.addr %s323, 64
        %s325 = scalar_lea.vmem [#allocation3], %s324
        // Predicated region
        $region53: #{tpu_custom_call.1} parent=51 // pred_check
          %p326 = pneg %p51
        $region54: #{tpu_custom_call.1} parent=51 // pred_check_branch
          %328 = sbr.rel (%p326) target = $region56
        $region55: #{tpu_custom_call.1} parent=51 // pred_region
          %329 = dma.done %s322, 1024
        $region56: #{tpu_custom_call.1} parent=51 // pred_fallthru
          _
        %s330 = sand.u32 %s64, 1
        %s331 = scalar_lea.sflag [#allocation7], %s330
        %s332 = sand.u32 %s64, 1
        %s333 = smul.addr %s332, 8
        %s334 = scalar_lea.vmem [#allocation6], %s333
        // Predicated region
        $region57: #{tpu_custom_call.1} parent=51 // pred_check
          %p335 = pneg %p77
        $region58: #{tpu_custom_call.1} parent=51 // pred_check_branch
          %337 = sbr.rel (%p335) target = $region60
        $region59: #{tpu_custom_call.1} parent=51 // pred_region
          %338 = dma.done %s331, 128
        $region60: #{tpu_custom_call.1} parent=51 // pred_fallthru
          _
        %s339 = sand.u32 %s38, 1
        %s340 = scalar_lea.sflag [#allocation4], %s339
        %s341 = sand.u32 %s38, 1
        %s342 = smul.addr %s341, 64
        %s343 = scalar_lea.vmem [#allocation3], %s342
        %p344 = pneg %p51
        %p345 = pneg %p48
        %s346 = sand.u32 %s64, 1
        %s347 = scalar_lea.sflag [#allocation7], %s346
        %s348 = sand.u32 %s64, 1
        %s349 = smul.addr %s348, 8
        %s350 = scalar_lea.vmem [#allocation6], %s349
        %p351 = pneg %p77
        %p352 = pneg %p74
        %p353 = scmp.lt.s32.totalorder %s30, 2
        %s354 = scalar_select %p353, %s30, 2
        %s355 = smul.addr %s354, 8
        %s356 = scalar_lea.vmem %s2, %s355
        %p357 = pneg %p103
        %p358 = pneg %p100
        %p359 = pneg %p124
        %p360 = pneg %p121
        %p361 = pneg %p145
        %p362 = pneg %p142
        %p363 = pneg %p166
        %p364 = pneg %p163
        %p365 = pneg %p187
        %p366 = pneg %p184
        %p367 = pneg %p208
        %p368 = pneg %p205
        %p369 = pneg %p234
        %p370 = pneg %p231
        %s371 = sand.u32 %s221, 1
        %s372 = scalar_lea.sflag [#allocation5], %s371
        %s373 = sand.u32 %s221, 1
        %s374 = smul.addr %s373, 8
        %s375 = scalar_lea.vmem [#allocation8], %s374
        %s376 = smul.u32 8, %s30
        %p377 = scmp.lt.s32.totalorder %s30, 2
        %s378 = scalar_select %p377, %s30, 2
        %s379 = smul.addr %s378, 8
        %s380 = scalar_lea.vmem %s2, %s379
        %v381 = vld [vmem:[%s3] sm:$0xff]
        %v382 = vld [vmem:[%s3 + $0x8] sm:$0xff]
        %v383 = vld [vmem:[%s3 + $0x10] sm:$0xff]
        %v384 = vld [vmem:[%s3 + $0x18] sm:$0xff]
        %v385 = vld [vmem:[%s4] sm:$0x1]
        %v386 = vld [vmem:[%s325] sm:$0xff]
        %v387 = vld [vmem:[%s325 + $0x8] sm:$0xff]
        %v388 = vld [vmem:[%s325 + $0x10] sm:$0xff]
        %v389 = vld [vmem:[%s325 + $0x18] sm:$0xff]
        %v390 = vld [vmem:[%s325 + $0x20] sm:$0xff]
        %v391 = vld [vmem:[%s325 + $0x28] sm:$0xff]
        %v392 = vld [vmem:[%s325 + $0x30] sm:$0xff]
        %v393 = vld [vmem:[%s325 + $0x38] sm:$0xff]
        %v395 = vlaneseq
        %v396 = vshrl.u32 %v395, 7
        %v397 = vsub.s32 0, %v396
        %v398 = vrot.slane %v385, %v397
        %vm400 = vcmask 261120
        %v402 = vsel %vm400, %v386, 0
        %v405 = vsel %vm400, %v387, 0
        %v408 = vsel %vm400, %v388, 0
        %v411 = vsel %vm400, %v389, 0
        %v414 = vsel %vm400, %v390, 0
        %v417 = vsel %vm400, %v391, 0
        %v420 = vsel %vm400, %v392, 0
        %v423 = vsel %vm400, %v393, 0
        %425 = vmatprep.subr.mxu0 0.0
        %426 = vmatpush1.msra.mxu0 %v381
        %427 = vmatprep.subr.mxu0 0.0
        %428 = vmatpush1.msra.mxu0 %v382
        %429 = vmatprep.subr.mxu0 0.0
        %430 = vmatpush1.msra.mxu0 %v383
        %431 = vmatprep.subr.mxu0 0.0
        %432 = vmatpush1.msra.mxu0 %v384
        %433 = vmatprep.subr.mxu0 0.0
        %434 = vmatpush1.msra.mxu0 0.0
        %435 = vmatprep.subr.mxu0 0.0
        %436 = vmatpush1.msra.mxu0 0.0
        %437 = vmatprep.subr.mxu0 0.0
        %438 = vmatpush1.msra.mxu0 0.0
        %439 = vmatprep.subr.mxu0 0.0
        %440 = vmatpush1.msra.mxu0 0.0
        %441 = vmatprep.subr.mxu0 0.0
        %442 = vmatpush1.msra.mxu0 0.0
        %443 = vmatprep.subr.mxu0 0.0
        %444 = vmatpush1.msra.mxu0 0.0
        %445 = vmatprep.subr.mxu0 0.0
        %446 = vmatpush1.msra.mxu0 0.0
        %447 = vmatprep.subr.mxu0 0.0
        %448 = vmatpush1.msra.mxu0 0.0
        %449 = vmatprep.subr.mxu0 0.0
        %450 = vmatpush1.msra.mxu0 0.0
        %451 = vmatprep.subr.mxu0 0.0
        %452 = vmatpush1.msra.mxu0 0.0
        %453 = vmatprep.subr.mxu0 0.0
        %454 = vmatpush1.msra.mxu0 0.0
        %455 = vmatprep.subr.mxu0 0.0
        %456 = vmatpush1.msra.mxu0 0.0
        %457 = vmatprep.subr.mxu0 0.0
        %458 = vmatpush1.msra.mxu0 0.0
        %459 = vmatprep.subr.mxu0 0.0
        %460 = vmatpush1.msra.mxu0 0.0
        %461 = vmatprep.subr.mxu0 0.0
        %462 = vmatpush1.msra.mxu0 0.0
        %463 = vmatprep.subr.mxu0 0.0
        %464 = vmatpush1.msra.mxu0 0.0
        %465 = vmatprep.subr.mxu0 0.0
        %466 = vmatpush1.msra.mxu0 0.0
        %467 = vmatprep.subr.mxu0 0.0
        %468 = vmatpush1.msra.mxu0 0.0
        %469 = vmatprep.subr.mxu0 0.0
        %470 = vmatpush1.msra.mxu0 0.0
        %471 = vmatprep.subr.mxu0 0.0
        %472 = vmatpush1.msra.mxu0 0.0
        %473 = vmatprep.subr.mxu0 0.0
        %474 = vmatpush1.msra.mxu0 0.0
        %475 = vmatprep.subr.mxu0 0.0
        %476 = vmatpush1.msra.mxu0 0.0
        %477 = vmatprep.subr.mxu0 0.0
        %478 = vmatpush1.msra.mxu0 0.0
        %479 = vmatprep.subr.mxu0 0.0
        %480 = vmatpush1.msra.mxu0 0.0
        %481 = vmatprep.subr.mxu0 0.0
        %482 = vmatpush1.msra.mxu0 0.0
        %483 = vmatprep.subr.mxu0 0.0
        %484 = vmatpush1.msra.mxu0 0.0
        %485 = vmatprep.subr.mxu0 0.0
        %486 = vmatpush1.msra.mxu0 0.0
        %487 = vmatprep.subr.mxu0 0.0
        %488 = vmatpush1.msra.mxu0 0.0
        %489 = vmatprep.mubr.f32.mxu0 0.0
        %490 = vmatmul.mubr.f32.gmra.mrb[0].mxu0 %v402
        %v491 = vpop.f32.mrb[0].mxu0
        %v492 = vadd.f32 %v398, %v491
        %v493 = vpop.f32.mrb[0].mxu0
        %494 = vmatprep.mubr.f32.mxu0 0.0
        %495 = vmatmul.mubr.f32.gmra.mrb[0].mxu0 %v405
        %v496 = vpop.f32.mrb[0].mxu0
        %v497 = vadd.f32 %v398, %v496
        %v498 = vpop.f32.mrb[0].mxu0
        %499 = vmatprep.mubr.f32.mxu0 0.0
        %500 = vmatmul.mubr.f32.gmra.mrb[0].mxu0 %v408
        %v501 = vpop.f32.mrb[0].mxu0
        %v502 = vadd.f32 %v398, %v501
        %v503 = vpop.f32.mrb[0].mxu0
        %504 = vmatprep.mubr.f32.mxu0 0.0
        %505 = vmatmul.mubr.f32.gmra.mrb[0].mxu0 %v411
        %v506 = vpop.f32.mrb[0].mxu0
        %v507 = vadd.f32 %v398, %v506
        %v508 = vpop.f32.mrb[0].mxu0
        %509 = vmatprep.mubr.f32.mxu0 0.0
        %510 = vmatmul.mubr.f32.gmra.mrb[0].mxu0 %v414
        %v511 = vpop.f32.mrb[0].mxu0
        %v512 = vadd.f32 %v398, %v511
        %v513 = vpop.f32.mrb[0].mxu0
        %514 = vmatprep.mubr.f32.mxu0 0.0
        %515 = vmatmul.mubr.f32.gmra.mrb[0].mxu0 %v417
        %v516 = vpop.f32.mrb[0].mxu0
        %v517 = vadd.f32 %v398, %v516
        %v518 = vpop.f32.mrb[0].mxu0
        %519 = vmatprep.mubr.f32.mxu0 0.0
        %520 = vmatmul.mubr.f32.gmra.mrb[0].mxu0 %v420
        %v521 = vpop.f32.mrb[0].mxu0
        %v522 = vadd.f32 %v398, %v521
        %v523 = vpop.f32.mrb[0].mxu0
        %524 = vmatprep.mubr.f32.mxu0 0.0
        %525 = vmatmul.mubr.f32.gmra.mrb[0].mxu0 %v423
        %v526 = vpop.f32.mrb[0].mxu0
        %v527 = vadd.f32 %v398, %v526
        %v528 = vpop.f32.mrb[0].mxu0
        %529 = vdwg.mxu0
        %v530 = vld [vmem:[%s334] sm:$0xff]
        %v532 = vsel %vm400, %v530, 0
        %534 = vmatprep.subr.mxu0 0.0
        %535 = vmatpush1.msra.mxu0 %v381
        %536 = vmatprep.subr.mxu0 0.0
        %537 = vmatpush1.msra.mxu0 %v382
        %538 = vmatprep.subr.mxu0 0.0
        %539 = vmatpush1.msra.mxu0 %v383
        %540 = vmatprep.subr.mxu0 0.0
        %541 = vmatpush1.msra.mxu0 %v384
        %542 = vmatprep.subr.mxu0 0.0
        %543 = vmatpush1.msra.mxu0 0.0
        %544 = vmatprep.subr.mxu0 0.0
        %545 = vmatpush1.msra.mxu0 0.0
        %546 = vmatprep.subr.mxu0 0.0
        %547 = vmatpush1.msra.mxu0 0.0
        %548 = vmatprep.subr.mxu0 0.0
        %549 = vmatpush1.msra.mxu0 0.0
        %550 = vmatprep.subr.mxu0 0.0
        %551 = vmatpush1.msra.mxu0 0.0
        %552 = vmatprep.subr.mxu0 0.0
        %553 = vmatpush1.msra.mxu0 0.0
        %554 = vmatprep.subr.mxu0 0.0
        %555 = vmatpush1.msra.mxu0 0.0
        %556 = vmatprep.subr.mxu0 0.0
        %557 = vmatpush1.msra.mxu0 0.0
        %558 = vmatprep.subr.mxu0 0.0
        %559 = vmatpush1.msra.mxu0 0.0
        %560 = vmatprep.subr.mxu0 0.0
        %561 = vmatpush1.msra.mxu0 0.0
        %562 = vmatprep.subr.mxu0 0.0
        %563 = vmatpush1.msra.mxu0 0.0
        %564 = vmatprep.subr.mxu0 0.0
        %565 = vmatpush1.msra.mxu0 0.0
        %566 = vmatprep.subr.mxu0 0.0
        %567 = vmatpush1.msra.mxu0 0.0
        %568 = vmatprep.subr.mxu0 0.0
        %569 = vmatpush1.msra.mxu0 0.0
        %570 = vmatprep.subr.mxu0 0.0
        %571 = vmatpush1.msra.mxu0 0.0
        %572 = vmatprep.subr.mxu0 0.0
        %573 = vmatpush1.msra.mxu0 0.0
        %574 = vmatprep.subr.mxu0 0.0
        %575 = vmatpush1.msra.mxu0 0.0
        %576 = vmatprep.subr.mxu0 0.0
        %577 = vmatpush1.msra.mxu0 0.0
        %578 = vmatprep.subr.mxu0 0.0
        %579 = vmatpush1.msra.mxu0 0.0
        %580 = vmatprep.subr.mxu0 0.0
        %581 = vmatpush1.msra.mxu0 0.0
        %582 = vmatprep.subr.mxu0 0.0
        %583 = vmatpush1.msra.mxu0 0.0
        %584 = vmatprep.subr.mxu0 0.0
        %585 = vmatpush1.msra.mxu0 0.0
        %586 = vmatprep.subr.mxu0 0.0
        %587 = vmatpush1.msra.mxu0 0.0
        %588 = vmatprep.subr.mxu0 0.0
        %589 = vmatpush1.msra.mxu0 0.0
        %590 = vmatprep.subr.mxu0 0.0
        %591 = vmatpush1.msra.mxu0 0.0
        %592 = vmatprep.subr.mxu0 0.0
        %593 = vmatpush1.msra.mxu0 0.0
        %594 = vmatprep.subr.mxu0 0.0
        %595 = vmatpush1.msra.mxu0 0.0
        %596 = vmatprep.subr.mxu0 0.0
        %597 = vmatpush1.msra.mxu0 0.0
        %598 = vmatprep.mubr.f32.mxu0 0.0
        %599 = vmatmul.mubr.f32.gmra.mrb[0].mxu0 %v532
        %v600 = vpop.f32.mrb[0].mxu0
        %v601 = vadd.f32 %v398, %v600
        %v602 = vpop.f32.mrb[0].mxu0
        %603 = vdwg.mxu0
        %v605 = vsel %vm400, %v601, 0
        %607 = vmatprep.subr.mxu0 0.0
        %608 = vmatpush1.msra.mxu0 %v381
        %609 = vmatprep.subr.mxu0 0.0
        %610 = vmatpush1.msra.mxu0 %v382
        %611 = vmatprep.subr.mxu0 0.0
        %612 = vmatpush1.msra.mxu0 %v383
        %613 = vmatprep.subr.mxu0 0.0
        %614 = vmatpush1.msra.mxu0 %v384
        %615 = vmatprep.subr.mxu0 0.0
        %616 = vmatpush1.msra.mxu0 0.0
        %617 = vmatprep.subr.mxu0 0.0
        %618 = vmatpush1.msra.mxu0 0.0
        %619 = vmatprep.subr.mxu0 0.0
        %620 = vmatpush1.msra.mxu0 0.0
        %621 = vmatprep.subr.mxu0 0.0
        %622 = vmatpush1.msra.mxu0 0.0
        %623 = vmatprep.subr.mxu0 0.0
        %624 = vmatpush1.msra.mxu0 0.0
        %625 = vmatprep.subr.mxu0 0.0
        %626 = vmatpush1.msra.mxu0 0.0
        %627 = vmatprep.subr.mxu0 0.0
        %628 = vmatpush1.msra.mxu0 0.0
        %629 = vmatprep.subr.mxu0 0.0
        %630 = vmatpush1.msra.mxu0 0.0
        %631 = vmatprep.subr.mxu0 0.0
        %632 = vmatpush1.msra.mxu0 0.0
        %633 = vmatprep.subr.mxu0 0.0
        %634 = vmatpush1.msra.mxu0 0.0
        %635 = vmatprep.subr.mxu0 0.0
        %636 = vmatpush1.msra.mxu0 0.0
        %637 = vmatprep.subr.mxu0 0.0
        %638 = vmatpush1.msra.mxu0 0.0
        %639 = vmatprep.subr.mxu0 0.0
        %640 = vmatpush1.msra.mxu0 0.0
        %641 = vmatprep.subr.mxu0 0.0
        %642 = vmatpush1.msra.mxu0 0.0
        %643 = vmatprep.subr.mxu0 0.0
        %644 = vmatpush1.msra.mxu0 0.0
        %645 = vmatprep.subr.mxu0 0.0
        %646 = vmatpush1.msra.mxu0 0.0
        %647 = vmatprep.subr.mxu0 0.0
        %648 = vmatpush1.msra.mxu0 0.0
        %649 = vmatprep.subr.mxu0 0.0
        %650 = vmatpush1.msra.mxu0 0.0
        %651 = vmatprep.subr.mxu0 0.0
        %652 = vmatpush1.msra.mxu0 0.0
        %653 = vmatprep.subr.mxu0 0.0
        %654 = vmatpush1.msra.mxu0 0.0
        %655 = vmatprep.subr.mxu0 0.0
        %656 = vmatpush1.msra.mxu0 0.0
        %657 = vmatprep.subr.mxu0 0.0
        %658 = vmatpush1.msra.mxu0 0.0
        %659 = vmatprep.subr.mxu0 0.0
        %660 = vmatpush1.msra.mxu0 0.0
        %661 = vmatprep.subr.mxu0 0.0
        %662 = vmatpush1.msra.mxu0 0.0
        %663 = vmatprep.subr.mxu0 0.0
        %664 = vmatpush1.msra.mxu0 0.0
        %665 = vmatprep.subr.mxu0 0.0
        %666 = vmatpush1.msra.mxu0 0.0
        %667 = vmatprep.subr.mxu0 0.0
        %668 = vmatpush1.msra.mxu0 0.0
        %669 = vmatprep.subr.mxu0 0.0
        %670 = vmatpush1.msra.mxu0 0.0
        %671 = vmatprep.mubr.f32.mxu0 0.0
        %672 = vmatmul.mubr.f32.gmra.mrb[0].mxu0 %v605
        %v673 = vpop.f32.mrb[0].mxu0
        %v674 = vadd.f32 %v398, %v673
        %v675 = vpop.f32.mrb[0].mxu0
        %676 = vdwg.mxu0
        %v677 = vld [vmem:[%s5] sm:$0x1]
        %v678 = vld [vmem:[%s6] sm:$0x1]
        %v680 = vlaneseq
        %v681 = vshrl.u32 %v680, 7
        %v682 = vsub.s32 0, %v681
        %v683 = vrot.slane %v677, %v682
        %v685 = vmul.f32 %v492, %v683
        %v686 = vmul.f32 %v497, %v683
        %v687 = vmul.f32 %v502, %v683
        %v688 = vmul.f32 %v507, %v683
        %v689 = vmul.f32 %v512, %v683
        %v690 = vmul.f32 %v517, %v683
        %v691 = vmul.f32 %v522, %v683
        %v692 = vmul.f32 %v527, %v683
        %v693 = vsel %vm400, %v685, 0.0
        %694 = vadd.xlane.f32.xlu0 %v693
        %v695 = vpop.xlane.xlu0 %694
        %v696 = vsel %vm400, %v686, 0.0
        %697 = vadd.xlane.f32.xlu0 %v696
        %v698 = vpop.xlane.xlu0 %697
        %v699 = vsel %vm400, %v687, 0.0
        %700 = vadd.xlane.f32.xlu0 %v699
        %v701 = vpop.xlane.xlu0 %700
        %v702 = vsel %vm400, %v688, 0.0
        %703 = vadd.xlane.f32.xlu0 %v702
        %v704 = vpop.xlane.xlu0 %703
        %v705 = vsel %vm400, %v689, 0.0
        %706 = vadd.xlane.f32.xlu0 %v705
        %v707 = vpop.xlane.xlu0 %706
        %v708 = vsel %vm400, %v690, 0.0
        %709 = vadd.xlane.f32.xlu0 %v708
        %v710 = vpop.xlane.xlu0 %709
        %v711 = vsel %vm400, %v691, 0.0
        %712 = vadd.xlane.f32.xlu0 %v711
        %v713 = vpop.xlane.xlu0 %712
        %v714 = vsel %vm400, %v692, 0.0
        %715 = vadd.xlane.f32.xlu0 %v714
        %v716 = vpop.xlane.xlu0 %715
        %v718 = vlaneseq
        %v719 = vshrl.u32 %v718, 7
        %v720 = vsub.s32 0, %v719
        %v721 = vrot.slane %v678, %v720
        %v723 = vmul.f32 %v674, %v721
        %v724 = vsel %vm400, %v723, 0.0
        %725 = vadd.xlane.f32.xlu0 %v724
        %v726 = vpop.xlane.xlu0 %725
        %v727 = vld [vmem:[#allocation2] sm:$0x1]
        %v729 = vlaneseq
        %v730 = vshrl.u32 %v729, 7
        %v731 = vsub.s32 0, %v730
        %v732 = vrot.slane %v727, %v731
        %v734 = vadd.f32 %v726, %v732
        %736 = vset.pattern.permute.xlu0 0
        %737 = vperm.xlu0 %736, %v734
        %v738 = vpop.permute.xlu0 %737
        %v739 = vlaneseq
        %v740 = vshrl.u32 %v739, 7
        %v741 = vsub.s32 0, %v740
        %v742 = vrot.slane %v738, %v741
        %v743 = vlaneseq
        %v744 = vshrl.u32 %v743, 7
        %v745 = vsub.s32 1, %v744
        %v746 = vrot.slane %v738, %v745
        %v747 = vlaneseq
        %v748 = vshrl.u32 %v747, 7
        %v749 = vsub.s32 2, %v748
        %v750 = vrot.slane %v738, %v749
        %v751 = vlaneseq
        %v752 = vshrl.u32 %v751, 7
        %v753 = vsub.s32 3, %v752
        %v754 = vrot.slane %v738, %v753
        %v755 = vlaneseq
        %v756 = vshrl.u32 %v755, 7
        %v757 = vsub.s32 4, %v756
        %v758 = vrot.slane %v738, %v757
        %v759 = vlaneseq
        %v760 = vshrl.u32 %v759, 7
        %v761 = vsub.s32 5, %v760
        %v762 = vrot.slane %v738, %v761
        %v763 = vlaneseq
        %v764 = vshrl.u32 %v763, 7
        %v765 = vsub.s32 6, %v764
        %v766 = vrot.slane %v738, %v765
        %v767 = vlaneseq
        %v768 = vshrl.u32 %v767, 7
        %v769 = vsub.s32 7, %v768
        %v770 = vrot.slane %v738, %v769
        %v779 = vadd.f32 %v695, %v742
        %v780 = vadd.f32 %v698, %v746
        %v781 = vadd.f32 %v701, %v750
        %v782 = vadd.f32 %v704, %v754
        %v783 = vadd.f32 %v707, %v758
        %v784 = vadd.f32 %v710, %v762
        %v785 = vadd.f32 %v713, %v766
        %v786 = vadd.f32 %v716, %v770
        %v787 = vld [vmem:[%s380] sm:$0xff]
        %vm788 = vcmp.gt.f32.partialorder %v787, 0.0
        %797 = vset.pattern.permute.xlu0 0
        %798 = vperm.xlu0 %797, %v779
        %v799 = vpop.permute.xlu0 %798
        %800 = vset.pattern.permute.xlu0 0
        %801 = vperm.xlu0 %800, %v780
        %v802 = vpop.permute.xlu0 %801
        %803 = vset.pattern.permute.xlu0 0
        %804 = vperm.xlu0 %803, %v781
        %v805 = vpop.permute.xlu0 %804
        %806 = vset.pattern.permute.xlu0 0
        %807 = vperm.xlu0 %806, %v782
        %v808 = vpop.permute.xlu0 %807
        %809 = vset.pattern.permute.xlu0 0
        %810 = vperm.xlu0 %809, %v783
        %v811 = vpop.permute.xlu0 %810
        %812 = vset.pattern.permute.xlu0 0
        %813 = vperm.xlu0 %812, %v784
        %v814 = vpop.permute.xlu0 %813
        %815 = vset.pattern.permute.xlu0 0
        %816 = vperm.xlu0 %815, %v785
        %v817 = vpop.permute.xlu0 %816
        %818 = vset.pattern.permute.xlu0 0
        %819 = vperm.xlu0 %818, %v786
        %v820 = vpop.permute.xlu0 %819
        %v821 = vlaneseq
        %v822 = vand.u32 %v821, 127
        %v823 = vlaneseq
        %v824 = vshrl.u32 %v823, 7
        %v825 = vsub.s32 %v822, %v824
        %v826 = vrot.slane %v799, %v825
        %v827 = vlaneseq
        %v828 = vshrl.u32 %v827, 7
        %v829 = vsub.s32 %v822, %v828
        %v830 = vrot.slane %v802, %v829
        %v831 = vlaneseq
        %v832 = vshrl.u32 %v831, 7
        %v833 = vsub.s32 %v822, %v832
        %v834 = vrot.slane %v805, %v833
        %v835 = vlaneseq
        %v836 = vshrl.u32 %v835, 7
        %v837 = vsub.s32 %v822, %v836
        %v838 = vrot.slane %v808, %v837
        %v839 = vlaneseq
        %v840 = vshrl.u32 %v839, 7
        %v841 = vsub.s32 %v822, %v840
        %v842 = vrot.slane %v811, %v841
        %v843 = vlaneseq
        %v844 = vshrl.u32 %v843, 7
        %v845 = vsub.s32 %v822, %v844
        %v846 = vrot.slane %v814, %v845
        %v847 = vlaneseq
        %v848 = vshrl.u32 %v847, 7
        %v849 = vsub.s32 %v822, %v848
        %v850 = vrot.slane %v817, %v849
        %v851 = vlaneseq
        %v852 = vshrl.u32 %v851, 7
        %v853 = vsub.s32 %v822, %v852
        %v854 = vrot.slane %v820, %v853
        %vm855 = vcmask 1041409
        %v856 = vsel %vm855, %v830, %v826
        %vm857 = vcmask 1042434
        %v858 = vsel %vm857, %v834, %v856
        %vm859 = vcmask 1043459
        %v860 = vsel %vm859, %v838, %v858
        %vm861 = vcmask 1044484
        %v862 = vsel %vm861, %v842, %v860
        %vm863 = vcmask 1045509
        %v864 = vsel %vm863, %v846, %v862
        %vm865 = vcmask 1046534
        %v866 = vsel %vm865, %v850, %v864
        %vm867 = vcmask 1047559
        %v868 = vsel %vm867, %v854, %v866
        %v870 = vsel %vm788, %v868, -1e+30
        %vm871 = vcmask 64512
        %v872 = vsel %vm871, %v870, -inf
        %873 = vmax.xlane.f32.xlu0 %v872
        %v874 = vpop.xlane.xlu0 %873
        %v875 = vsub.f32 %v870, %v874
        %v876 = vmul.f32 %v875, 1.442695
        %v877 = vpow.pop %v876
        %v878 = vsel %vm871, %v877, 0.0
        %879 = vadd.xlane.f32.xlu0 %v878
        %v880 = vpop.xlane.xlu0 %879
        %v881 = vrcp.pop %v880
        %v882 = vmul.f32 %v877, %v881
        %v883 = vlaneseq
        %v884 = vshrl.u32 %v883, 7
        %v885 = vsub.s32 0, %v884
        %v886 = vrot.slane %v882, %v885
        %888 = vbcast.lane.b32.xlu0 %v886, 256
        %v889 = vpop.permute.xlu0 %888
        %v890 = vlaneseq
        %v891 = vshrl.u32 %v890, 7
        %v892 = vsub.s32 1, %v891
        %v893 = vrot.slane %v882, %v892
        %895 = vbcast.lane.b32.xlu0 %v893, 256
        %v896 = vpop.permute.xlu0 %895
        %v897 = vlaneseq
        %v898 = vshrl.u32 %v897, 7
        %v899 = vsub.s32 2, %v898
        %v900 = vrot.slane %v882, %v899
        %902 = vbcast.lane.b32.xlu0 %v900, 256
        %v903 = vpop.permute.xlu0 %902
        %v904 = vlaneseq
        %v905 = vshrl.u32 %v904, 7
        %v906 = vsub.s32 3, %v905
        %v907 = vrot.slane %v882, %v906
        %909 = vbcast.lane.b32.xlu0 %v907, 256
        %v910 = vpop.permute.xlu0 %909
        %v911 = vlaneseq
        %v912 = vshrl.u32 %v911, 7
        %v913 = vsub.s32 4, %v912
        %v914 = vrot.slane %v882, %v913
        %916 = vbcast.lane.b32.xlu0 %v914, 256
        %v917 = vpop.permute.xlu0 %916
        %v918 = vlaneseq
        %v919 = vshrl.u32 %v918, 7
        %v920 = vsub.s32 5, %v919
        %v921 = vrot.slane %v882, %v920
        %923 = vbcast.lane.b32.xlu0 %v921, 256
        %v924 = vpop.permute.xlu0 %923
        %v925 = vlaneseq
        %v926 = vshrl.u32 %v925, 7
        %v927 = vsub.s32 6, %v926
        %v928 = vrot.slane %v882, %v927
        %930 = vbcast.lane.b32.xlu0 %v928, 256
        %v931 = vpop.permute.xlu0 %930
        %v932 = vlaneseq
        %v933 = vshrl.u32 %v932, 7
        %v934 = vsub.s32 7, %v933
        %v935 = vrot.slane %v882, %v934
        %937 = vbcast.lane.b32.xlu0 %v935, 256
        %v938 = vpop.permute.xlu0 %937
        %v939 = vmul.f32 %v492, %v889
        %v940 = vmul.f32 %v497, %v896
        %v941 = vmul.f32 %v502, %v903
        %v942 = vmul.f32 %v507, %v910
        %v943 = vmul.f32 %v512, %v917
        %v944 = vmul.f32 %v517, %v924
        %v945 = vmul.f32 %v522, %v931
        %v946 = vmul.f32 %v527, %v938
        %v947 = vsel %vm400, %v939, 0.0
        %v948 = vrot.slane %v947, 4
        %v949 = vadd.f32 %v947, %v948
        %v950 = vrot.slane %v949, 2
        %v951 = vadd.f32 %v949, %v950
        %v952 = vrot.slane %v951, 1
        %v953 = vadd.f32 %v951, %v952
        %v954 = vsel %vm400, %v940, 0.0
        %v955 = vrot.slane %v954, 4
        %v956 = vadd.f32 %v954, %v955
        %v957 = vrot.slane %v956, 2
        %v958 = vadd.f32 %v956, %v957
        %v959 = vrot.slane %v958, 1
        %v960 = vadd.f32 %v958, %v959
        %v961 = vsel %vm400, %v941, 0.0
        %v962 = vrot.slane %v961, 4
        %v963 = vadd.f32 %v961, %v962
        %v964 = vrot.slane %v963, 2
        %v965 = vadd.f32 %v963, %v964
        %v966 = vrot.slane %v965, 1
        %v967 = vadd.f32 %v965, %v966
        %v968 = vsel %vm400, %v942, 0.0
        %v969 = vrot.slane %v968, 4
        %v970 = vadd.f32 %v968, %v969
        %v971 = vrot.slane %v970, 2
        %v972 = vadd.f32 %v970, %v971
        %v973 = vrot.slane %v972, 1
        %v974 = vadd.f32 %v972, %v973
        %v975 = vsel %vm400, %v943, 0.0
        %v976 = vrot.slane %v975, 4
        %v977 = vadd.f32 %v975, %v976
        %v978 = vrot.slane %v977, 2
        %v979 = vadd.f32 %v977, %v978
        %v980 = vrot.slane %v979, 1
        %v981 = vadd.f32 %v979, %v980
        %v982 = vsel %vm400, %v944, 0.0
        %v983 = vrot.slane %v982, 4
        %v984 = vadd.f32 %v982, %v983
        %v985 = vrot.slane %v984, 2
        %v986 = vadd.f32 %v984, %v985
        %v987 = vrot.slane %v986, 1
        %v988 = vadd.f32 %v986, %v987
        %v989 = vsel %vm400, %v945, 0.0
        %v990 = vrot.slane %v989, 4
        %v991 = vadd.f32 %v989, %v990
        %v992 = vrot.slane %v991, 2
        %v993 = vadd.f32 %v991, %v992
        %v994 = vrot.slane %v993, 1
        %v995 = vadd.f32 %v993, %v994
        %v996 = vsel %vm400, %v946, 0.0
        %v997 = vrot.slane %v996, 4
        %v998 = vadd.f32 %v996, %v997
        %v999 = vrot.slane %v998, 2
        %v1000 = vadd.f32 %v998, %v999
        %v1001 = vrot.slane %v1000, 1
        %v1002 = vadd.f32 %v1000, %v1001
        %v1011 = vsel %vm855, %v960, %v953
        %v1012 = vsel %vm857, %v967, %v1011
        %v1013 = vsel %vm859, %v974, %v1012
        %v1014 = vsel %vm861, %v981, %v1013
        %v1015 = vsel %vm863, %v988, %v1014
        %v1016 = vsel %vm865, %v995, %v1015
        %v1017 = vsel %vm867, %v1002, %v1016
        %1019 = vst.msk [vmem:[%s375] sm:$0xff] %vm400, %v1017
        %s1020 = sand.u32 %s221, 1
        %s1021 = scalar_lea.sflag [#allocation5], %s1020
        %s1022 = sand.u32 %s221, 1
        %s1023 = smul.addr %s1022, 8
        %s1024 = scalar_lea.vmem [#allocation8], %s1023
        // Predicated region
        $region61: #{tpu_custom_call.1} parent=51 // pred_check
          %p1025 = pneg %p231
        $region62: #{tpu_custom_call.1} parent=51 // pred_check_branch
          %1027 = sbr.rel (%p1025) target = $region64
        $region63: #{tpu_custom_call.1} parent=51 // pred_region
          %s1029 = ssub.s32 128, 128
          %1030 = vsyncadd %s1021, %s1029
          %s1031 = smul.addr %s30, 128
          %s1032 = scalar_lea.hbm %s8, %s1031
          %s1034 = sshll.u32 %s1024, 4
          %s1035 = int_to_ptr.vmem [resolvable:$true] %s1034
          %1037 = dma.vmem_to_hbm [thread:$0]  %s1035, 128, %s1032, %s1021
        $region64: #{tpu_custom_call.1} parent=51 // pred_fallthru
          _
      $region52: #{tpu_custom_call.1} parent=5 // pred_fallthru
        _
      %p1038 = scmp.le.s32.totalorder 2, %s25
      // Predicated region
      $region65: #{tpu_custom_call.1} parent=5 // pred_check
        %p1039 = pneg %p1038
      $region66: #{tpu_custom_call.1} parent=5 // pred_check_branch
        %1041 = sbr.rel (%p1039) target = $region68
      $region67: #{tpu_custom_call.1} parent=5 // pred_region
        %s1042 = ssub.s32 %s25, 2
        // Predicated region
        $region69: #{tpu_custom_call.1} parent=67 // pred_check
          %p1043 = pneg %p237
        $region70: #{tpu_custom_call.1} parent=67 // pred_check_branch
          %1045 = sbr.rel (%p1043) target = $region72
        $region71: #{tpu_custom_call.1} parent=67 // pred_region
          %s1046 = sand.u32 %s222, 1
          %s1047 = scalar_lea.sflag [#allocation5], %s1046
          %s1048 = sand.u32 %s222, 1
          %s1049 = smul.addr %s1048, 8
          %s1050 = scalar_lea.vmem [#allocation8], %s1049
          %1051 = dma.done %s1047, 128
        $region72: #{tpu_custom_call.1} parent=67 // pred_fallthru
          _
      $region68: #{tpu_custom_call.1} parent=5 // pred_fallthru
        _
    $region6: #{tpu_custom_call.1} parent=1 // loop_footer
      %s29 = sadd.s32 1, %s25
    $region7: #{tpu_custom_call.1} parent=1 // loop_footer_branch
      %24 = sbr.rel target = $region3
    $region8: #{tpu_custom_call.1} parent=1 // loop_exit
      _
    %1052 = vsyncpa [#allocation4], 1
    %s1053 = scalar_lea.sflag [#allocation4], 1
    %1054 = vsyncpa %s1053, 1
    %1055 = vsyncpa [#allocation7], 1
    %s1056 = scalar_lea.sflag [#allocation7], 1
    %1057 = vsyncpa %s1056, 1
    %1058 = vsyncpa [#allocation5], 1
    %s1059 = scalar_lea.sflag [#allocation5], 1
    %1060 = vsyncpa %s1059, 1

</llo_original>
